<compile_context>
chip_gen: v7x
topology: tpu7x:2x2x1
jax: 0.10.0
libtpu: 0.0.40
codegen_flags: <defaults>
</compile_context>

<pallas_src>
import functools

import numpy as np
import jax
import jax.numpy as jnp
from jax import lax
from jax.experimental import pallas as pl
from jax.experimental.pallas import tpu as pltpu

EPS = float(np.finfo(np.float32).eps)
LANE = 128
VMEM_LIMIT = 32 * 1024 * 1024


def _round_up(x, m):
    return ((x + m - 1) // m) * m


def _sigmoid(x):
    return 1.0 / (1.0 + jnp.exp(-x))


# ----------------------------------------------------------------------------
# Pallas kernels
# ----------------------------------------------------------------------------
def _linear_kernel(x_ref, w_ref, b_ref, o_ref, *, activation):
    y = jnp.dot(x_ref[...], w_ref[...], preferred_element_type=jnp.float32)
    y = y + b_ref[...]
    if activation == "tanh":
        y = jnp.tanh(y)
    o_ref[...] = y


def pallas_linear(x, w, b, activation="none", row_tile=256):
    """x: (M, K) @ w: (K, N) + b, row-tiled and pipelined ("parallel" rows)."""
    M, K = x.shape
    N = w.shape[1]
    TM = row_tile if M > row_tile else _round_up(M, 8)
    M_pad = _round_up(M, TM)
    if M_pad != M:
        x = jnp.pad(x, ((0, M_pad - M), (0, 0)))
    out = pl.pallas_call(
        functools.partial(_linear_kernel, activation=activation),
        grid_spec=pltpu.PrefetchScalarGridSpec(
            num_scalar_prefetch=0,
            grid=(M_pad // TM,),
            in_specs=[pl.BlockSpec((TM, K), lambda i: (i, 0)),
                      pl.BlockSpec((K, N), lambda i: (0, 0)),
                      pl.BlockSpec((1, N), lambda i: (0, 0))],
            out_specs=pl.BlockSpec((TM, N), lambda i: (i, 0))),
        out_shape=jax.ShapeDtypeStruct((M_pad, N), jnp.float32),
        compiler_params=pltpu.CompilerParams(
            dimension_semantics=("parallel",),
            vmem_limit_bytes=VMEM_LIMIT),
    )(x.astype(jnp.float32), w, b.reshape(1, N))
    return out[:M]


def _bimerge_kernel(f_ref, b_ref, wf_ref, wb_ref, bias_ref, o_ref, *, activation):
    y = jnp.dot(f_ref[...], wf_ref[...], preferred_element_type=jnp.float32)
    y = y + jnp.dot(b_ref[...], wb_ref[...], preferred_element_type=jnp.float32)
    y = y + bias_ref[...]
    if activation == "tanh":
        y = jnp.tanh(y)
    o_ref[...] = y


def merge_bidir(fwd, bwd, mrg, activation="none", row_tile=256):
    """Fused [fwd|bwd] concat + Linear (+tanh); writes the lane-padded slab."""
    B, T, H = fwd.shape
    N = mrg["w_f"].shape[1]
    M = B * T
    f2 = fwd.reshape(M, H)
    b2 = bwd.reshape(M, H)
    TM = row_tile if M > row_tile else _round_up(M, 8)
    M_pad = _round_up(M, TM)
    if M_pad != M:
        f2 = jnp.pad(f2, ((0, M_pad - M), (0, 0)))
        b2 = jnp.pad(b2, ((0, M_pad - M), (0, 0)))
    out = pl.pallas_call(
        functools.partial(_bimerge_kernel, activation=activation),
        grid_spec=pltpu.PrefetchScalarGridSpec(
            num_scalar_prefetch=0,
            grid=(M_pad // TM,),
            in_specs=[pl.BlockSpec((TM, H), lambda i: (i, 0)),
                      pl.BlockSpec((TM, H), lambda i: (i, 0)),
                      pl.BlockSpec((H, N), lambda i: (0, 0)),
                      pl.BlockSpec((H, N), lambda i: (0, 0)),
                      pl.BlockSpec((1, N), lambda i: (0, 0))],
            out_specs=pl.BlockSpec((TM, N), lambda i: (i, 0))),
        out_shape=jax.ShapeDtypeStruct((M_pad, N), jnp.float32),
        compiler_params=pltpu.CompilerParams(
            dimension_semantics=("parallel",),
            vmem_limit_bytes=VMEM_LIMIT),
    )(f2, b2, mrg["w_f"], mrg["w_b"], mrg["b"].reshape(1, N))
    return out[:M].reshape(B, T, N)


def _bilstm_step_kernel(xp_ref, m_ref, whh_ref, out_ref, h_ref, c_ref, *, hidden):
    """One timestep of BOTH direction chains; h/c persist in VMEM scratch.

    xp_ref:  (1, 2, B, 4H)  precomputed x@W_ih + b for fwd/bwd (bwd pre-reversed)
    m_ref:   (1, B, 1)      {0,1} validity mask (same for both directions)
    whh_ref: (2, H, 4H)     recurrent weights per direction (pre-transposed)
    out_ref: (1, 2, B, H)
    h_ref/c_ref: (2, B, H)  resident state
    """
    t = pl.program_id(0)

    @pl.when(t == 0)
    def _():
        h_ref[...] = jnp.zeros_like(h_ref)
        c_ref[...] = jnp.zeros_like(c_ref)

    valid = m_ref[0]                     # (B, 1)
    for d in range(2):                   # unrolled: two independent chains interleave
        xg = xp_ref[0, d]                # (B, 4H)
        h_prev = h_ref[d]
        c_prev = c_ref[d]
        gates = xg + jnp.dot(h_prev, whh_ref[d], preferred_element_type=jnp.float32)
        i_g = _sigmoid(gates[:, :hidden])
        f_g = _sigmoid(gates[:, hidden:2 * hidden])
        g_g = jnp.tanh(gates[:, 2 * hidden:3 * hidden])
        o_g = _sigmoid(gates[:, 3 * hidden:])
        c_new = f_g * c_prev + i_g * g_g
        h_new = o_g * jnp.tanh(c_new)
        h_ref[d] = valid * h_new + (1.0 - valid) * h_prev
        c_ref[d] = valid * c_new + (1.0 - valid) * c_prev
        out_ref[0, d] = valid * h_new    # padded steps emit zeros (pack semantics)


def _mmd_kernel(zi_ref, zj_ref, di_ref, dj_ref, ci_ref, cj_ref, o_ref, *, beta):
    i = pl.program_id(0)
    j = pl.program_id(1)

    @pl.when(jnp.logical_and(i == 0, j == 0))
    def _():
        o_ref[...] = jnp.zeros_like(o_ref)

    g = lax.dot_general(zi_ref[...], zj_ref[...],
                        dimension_numbers=(((1,), (1,)), ((), ())),
                        preferred_element_type=jnp.float32)
    logk = beta * (g - 0.5 * di_ref[...] - 0.5 * dj_ref[...])
    s = ci_ref[...] * jnp.exp(logk) * cj_ref[...]
    part = jnp.sum(jnp.sum(s, axis=1, keepdims=True), axis=0, keepdims=True)
    o_ref[...] += part


def pallas_mmd_masked(xs, mask_x, ys, mask_y, beta=1.0, tile=256):
    """MMD over masked (fixed-shape) row sets:
    MMD = sum_ij c_i c_j exp(beta*(z_i.z_j - 0.5|z_i|^2 - 0.5|z_j|^2)),
    c = +mask_x/nx for x rows, -mask_y/ny for y rows."""
    nx = jnp.sum(mask_x)
    ny = jnp.sum(mask_y)
    c = jnp.concatenate([mask_x / nx, -mask_y / ny], axis=0).astype(jnp.float32)
    z = jnp.concatenate([xs, ys], axis=0).astype(jnp.float32)
    N, D = z.shape
    TN = tile if N > tile else _round_up(N, 8)
    N_pad = _round_up(N, TN)
    if N_pad != N:
        z = jnp.pad(z, ((0, N_pad - N), (0, 0)))
        c = jnp.pad(c, ((0, N_pad - N),))
    d2 = jnp.sum(z * z, axis=1, keepdims=True)        # (N_pad, 1), computed once
    d2_row = d2.reshape(1, N_pad)
    c_col = c.reshape(N_pad, 1)
    c_row = c.reshape(1, N_pad)
    ntiles = N_pad // TN
    out = pl.pallas_call(
        functools.partial(_mmd_kernel, beta=float(beta)),
        grid_spec=pltpu.PrefetchScalarGridSpec(
            num_scalar_prefetch=0,
            grid=(ntiles, ntiles),
            in_specs=[pl.BlockSpec((TN, D), lambda i, j: (i, 0)),
                      pl.BlockSpec((TN, D), lambda i, j: (j, 0)),
                      pl.BlockSpec((TN, 1), lambda i, j: (i, 0)),
                      pl.BlockSpec((1, TN), lambda i, j: (0, j)),
                      pl.BlockSpec((TN, 1), lambda i, j: (i, 0)),
                      pl.BlockSpec((1, TN), lambda i, j: (0, j))],
            out_specs=pl.BlockSpec((1, 1), lambda i, j: (0, 0))),
        out_shape=jax.ShapeDtypeStruct((1, 1), jnp.float32),
        compiler_params=pltpu.CompilerParams(
            dimension_semantics=("arbitrary", "arbitrary"),
            vmem_limit_bytes=VMEM_LIMIT),
    )(z, z, d2, d2_row, c_col, c_row)
    return out[0, 0]


def _meancov_kernel(x_ref, w_ref, s1_ref, s2_ref):
    k = pl.program_id(0)

    @pl.when(k == 0)
    def _():
        s1_ref[...] = jnp.zeros_like(s1_ref)
        s2_ref[...] = jnp.zeros_like(s2_ref)

    xw = x_ref[...] * w_ref[...]
    s1_ref[...] += jnp.sum(xw, axis=0, keepdims=True)
    s2_ref[...] += lax.dot_general(xw, x_ref[...],
                                   dimension_numbers=(((0,), (0,)), ((), ())),
                                   preferred_element_type=jnp.float32)


def pallas_mean_cov(xs, mask, tile=256):
    """Masked mean and population covariance (matches torch cov(): /N)."""
    M, D = xs.shape
    TN = tile if M > tile else _round_up(M, 8)
    M_pad = _round_up(M, TN)
    xs = xs.astype(jnp.float32)
    mask = mask.astype(jnp.float32)
    if M_pad != M:
        xs = jnp.pad(xs, ((0, M_pad - M), (0, 0)))
        mask = jnp.pad(mask, ((0, M_pad - M),))
    w = mask.reshape(M_pad, 1)
    s1, s2 = pl.pallas_call(
        _meancov_kernel,
        grid_spec=pltpu.PrefetchScalarGridSpec(
            num_scalar_prefetch=0,
            grid=(M_pad // TN,),
            in_specs=[pl.BlockSpec((TN, D), lambda k: (k, 0)),
                      pl.BlockSpec((TN, 1), lambda k: (k, 0))],
            out_specs=[pl.BlockSpec((1, D), lambda k: (0, 0)),
                       pl.BlockSpec((D, D), lambda k: (0, 0))]),
        out_shape=(jax.ShapeDtypeStruct((1, D), jnp.float32),
                   jax.ShapeDtypeStruct((D, D), jnp.float32)),
        compiler_params=pltpu.CompilerParams(
            dimension_semantics=("arbitrary",),
            vmem_limit_bytes=VMEM_LIMIT),
    )(xs, w)
    n = jnp.sum(mask)
    mean = s1 / n
    cov = s2 / n - mean.T @ mean
    return mean, cov


def gauss_kld_masked(xs, mask_x, ys, mask_y, use_logdet=False, eps=EPS):
    """Matches the PyTorch gauss_kld (incl. the doubled-diagonal quirk)."""
    d = xs.shape[1]
    xm, xcov = pallas_mean_cov(xs, mask_x)
    ym, ycov = pallas_mean_cov(ys, mask_y)
    xcov = xcov + jnp.diag(jnp.diag(xcov) + eps)
    ycov = ycov + jnp.diag(jnp.diag(ycov) + eps)
    # TODO(synk): determinant / inverse have no Pallas equivalent; jnp.linalg used.
    if use_logdet:
        log_ratio = jnp.linalg.slogdet(ycov)[1] - jnp.linalg.slogdet(xcov)[1]
    else:
        dy = jnp.linalg.det(ycov)
        dx = jnp.linalg.det(xcov)
        log_ratio = (jnp.log(jnp.where(dy > eps, dy, eps))
                     - jnp.log(jnp.where(dx > eps, dx, eps)))
    ycovi = jnp.linalg.inv(ycov)
    xym = xm - ym
    hess = (xym @ ycovi @ xym.T)[0, 0]
    tr = jnp.trace(ycovi @ xcov)
    return 0.5 * (log_ratio + tr + hess - d)


# ----------------------------------------------------------------------------
# Bidirectional LSTM with pack_padded semantics
# ----------------------------------------------------------------------------
def _reverse_in_valid(x, lens):
    """Reverse each (B, T, D) sequence within its valid length, keep padding."""
    T = x.shape[1]
    t_idx = jnp.arange(T)[None, :]
    lens_b = lens[:, None]
    idx = jnp.where(t_idx < lens_b, lens_b - 1 - t_idx, t_idx)
    return jnp.take_along_axis(x, idx[:, :, None], axis=1)


def bilstm_fwd_bwd(x, lens, p):
    """x: (B, T, I) with I matching p['w_ih'].shape[0]; lens: (B,) int32.
    Both directions share a single input projection and a single recurrence
    pallas_call (direction axis of size 2)."""
    B, T, I = x.shape
    H = p["w_hh_t"].shape[1]                 # w_hh_t: (2, H, 4H)
    # hot path 1: input projection for all timesteps AND both directions at
    # once (tiled Pallas matmul, lane-dense 8H output)
    xp = pallas_linear(x.reshape(B * T, I), p["w_ih"], p["b"]).reshape(B, T, 8 * H)
    xp_f = xp[..., :4 * H]
    # projecting then reversing == reversing then projecting (per-step op)
    xp_b = _reverse_in_valid(xp[..., 4 * H:], lens)
    xp_s = jnp.stack([jnp.transpose(xp_f, (1, 0, 2)),
                      jnp.transpose(xp_b, (1, 0, 2))], axis=1)   # (T, 2, B, 4H)
    # per-step validity mask: valid steps occupy the head even after reversal
    step_mask = (jnp.arange(T)[:, None] < lens[None, :]).astype(jnp.float32)
    step_mask = step_mask.reshape(T, B, 1)
    # hot path 2: fused recurrence, grid over time, fwd+bwd h/c resident in VMEM
    outs = pl.pallas_call(
        functools.partial(_bilstm_step_kernel, hidden=H),
        grid_spec=pltpu.PrefetchScalarGridSpec(
            num_scalar_prefetch=0,
            grid=(T,),
            in_specs=[pl.BlockSpec((1, 2, B, 4 * H), lambda t: (t, 0, 0, 0)),
                      pl.BlockSpec((1, B, 1), lambda t: (t, 0, 0)),
                      pl.BlockSpec((2, H, 4 * H), lambda t: (0, 0, 0))],
            out_specs=pl.BlockSpec((1, 2, B, H), lambda t: (t, 0, 0, 0)),
            scratch_shapes=[pltpu.VMEM((2, B, H), jnp.float32),
                            pltpu.VMEM((2, B, H), jnp.float32)]),
        out_shape=jax.ShapeDtypeStruct((T, 2, B, H), jnp.float32),
        compiler_params=pltpu.CompilerParams(
            dimension_semantics=("arbitrary",),
            vmem_limit_bytes=VMEM_LIMIT),
    )(xp_s, step_mask, p["w_hh_t"])
    fwd = jnp.transpose(outs[:, 0], (1, 0, 2))                      # (B, T, H)
    bwd = _reverse_in_valid(jnp.transpose(outs[:, 1], (1, 0, 2)), lens)
    return fwd, bwd


# ----------------------------------------------------------------------------
# Parameter init (chainer/LeCun style, like init_like_chainer); weights stored
# pre-transposed (x @ W) with contraction/output dims zero-padded to 128 lanes.
# ----------------------------------------------------------------------------
def _lecun(key, shape, fan_in):
    return jax.random.normal(key, shape, jnp.float32) * (fan_in ** -0.5)


def init_bilstm(key, n_in, n_in_pad, n_hidden):
    ks = jax.random.split(key, 4)

    def one_w_ih(k):
        w = _lecun(k, (n_in, 4 * n_hidden), n_in)
        return jnp.pad(w, ((0, n_in_pad - n_in), (0, 0)))   # zero rows for K padding

    # fwd/bwd input weights concatenated along N -> single lane-dense matmul
    w_ih = jnp.concatenate([one_w_ih(ks[0]), one_w_ih(ks[2])], axis=1)   # (I_pad, 8H)
    # recurrent weights stacked along a direction axis (pre-transposed)
    w_hh_t = jnp.stack([_lecun(ks[1], (n_hidden, 4 * n_hidden), n_hidden),
                        _lecun(ks[3], (n_hidden, 4 * n_hidden), n_hidden)], axis=0)
    b = jnp.zeros((8 * n_hidden,), jnp.float32)              # (b_ih + b_hh) fwd|bwd
    return {"w_ih": w_ih, "w_hh_t": w_hh_t, "b": b}


def init_merge(key, n_in_half, n_out, n_out_pad):
    """Linear(2*n_in_half -> n_out) split into fwd/bwd halves, output lane-padded."""
    k1, k2 = jax.random.split(key)
    fan_in = 2 * n_in_half
    pad = n_out_pad - n_out
    w_f = jnp.pad(_lecun(k1, (n_in_half, n_out), fan_in), ((0, 0), (0, pad)))
    w_b = jnp.pad(_lecun(k2, (n_in_half, n_out), fan_in), ((0, 0), (0, pad)))
    b = jnp.zeros((n_out_pad,), jnp.float32)
    return {"w_f": w_f, "w_b": w_b, "b": b}


# ----------------------------------------------------------------------------
# E2E model (unsupervised forward path)
# ----------------------------------------------------------------------------
class E2E:
    def __init__(self, idim, odim, eprojs=32, eunits=32, elayers=2,
                 unsupervised_loss="mmd", seed=0):
        key = jax.random.PRNGKey(seed)
        ks = list(jax.random.split(key, 3 + 2 * elayers))
        self.idim, self.odim = idim, odim
        self.eprojs, self.eunits, self.elayers = eprojs, eunits, elayers
        self.unsupervised_loss = unsupervised_loss
        self.sos = self.eos = odim - 1
        self.subsample = np.ones(elayers + 1, dtype=np.int64)

        self.idim_pad = _round_up(idim, LANE)
        self.eprojs_pad = _round_up(eprojs, LANE)

        # enc_t = EmbedRNN(odim, eprojs): Embedding ~ N(0,1) (chainer EmbedID),
        # embedding columns zero-padded so the gather yields a 128-lane slab.
        emb = jax.random.normal(ks[0], (odim, eprojs), jnp.float32)
        self.embed_w = jnp.pad(emb, ((0, 0), (0, self.eprojs_pad - eprojs)))
        self.enc_t_rnn = init_bilstm(ks[1], eprojs, self.eprojs_pad, eprojs)
        self.enc_t_merge = init_merge(ks[2], eprojs, eprojs, self.eprojs_pad)

        # enc ('blstmp'): elayers x [BiLSTM(in->eunits), Linear(2*eunits->eprojs), tanh]
        self.enc_layers = []
        for l in range(elayers):
            n_in = idim if l == 0 else eprojs
            n_in_pad = self.idim_pad if l == 0 else self.eprojs_pad
            rnn = init_bilstm(ks[3 + 2 * l], n_in, n_in_pad, eunits)
            mrg = init_merge(ks[4 + 2 * l], eunits, eprojs, self.eprojs_pad)
            self.enc_layers.append((rnn, mrg))
        # shared "common" layer = last encoder layer
        self.enc_common_rnn, self.enc_common_merge = self.enc_layers[-1]

    # --- sub-modules -------------------------------------------------------
    def enc_forward(self, xpad, xlens):
        h = jnp.pad(xpad.astype(jnp.float32),
                    ((0, 0), (0, 0), (0, self.idim_pad - self.idim)))
        for rnn, mrg in self.enc_layers:
            fwd, bwd = bilstm_fwd_bwd(h, xlens, rnn)
            h = merge_bidir(fwd, bwd, mrg, activation="tanh")
        return h, xlens

    def enc_t_forward(self, ypad, ylens):
        h = jnp.take(self.embed_w, ypad, axis=0)          # embedding gather (glue)
        fwd, bwd = bilstm_fwd_bwd(h, ylens, self.enc_t_rnn)
        h = merge_bidir(fwd, bwd, self.enc_t_merge, activation="none")
        return h, ylens

    def forward_common(self, hpad, hlens):
        fwd, bwd = bilstm_fwd_bwd(hpad, hlens, self.enc_common_rnn)
        h = merge_bidir(fwd, bwd, self.enc_common_merge, activation="tanh")
        return h, hlens

    # --- unsupervised forward ---------------------------------------------
    def forward(self, xpad, xlens, ypad, ylens, only_encoder=False):
        xlens_a = jnp.asarray(xlens, jnp.int32)
        ylens_a = jnp.asarray(ylens, jnp.int32)
        B, Tx = xpad.shape[0], xpad.shape[1]
        Ty = ypad.shape[1]

        # text branch: enc_t -> shared common layer
        hypad, _ = self.enc_t_forward(ypad, ylens_a)
        hypad, _ = self.forward_common(hypad, ylens_a)

        # speech branch: blstmp encoder
        hxpad, _ = self.enc_forward(xpad, xlens_a)

        # fixed-shape "packed" representation: flat rows + validity mask
        # (no dynamic shapes -> jit-safe, masked inside the loss kernels)
        mask_x = (jnp.arange(Tx)[None, :] < xlens_a[:, None]).astype(jnp.float32)
        mask_y = (jnp.arange(Ty)[None, :] < ylens_a[:, None]).astype(jnp.float32)
        mask_x = mask_x.reshape(B * Tx)
        mask_y = mask_y.reshape(B * Ty)
        hx = hxpad.reshape(B * Tx, -1)      # lane-padded features (zeros past eprojs)
        hy = hypad.reshape(B * Ty, -1)

        if only_encoder:
            return (hx[:, :self.eprojs], mask_x), (hy[:, :self.eprojs], mask_y)

        if self.unsupervised_loss == "mmd":
            # zero feature padding leaves dot products / norms unchanged
            loss_unsupervised = pallas_mmd_masked(hx, mask_x, hy, mask_y)
        elif self.unsupervised_loss == "gauss":
            loss_unsupervised = gauss_kld_masked(hx[:, :self.eprojs], mask_x,
                                                 hy[:, :self.eprojs], mask_y)
        elif self.unsupervised_loss == "gausslogdet":
            loss_unsupervised = gauss_kld_masked(hx[:, :self.eprojs], mask_x,
                                                 hy[:, :self.eprojs], mask_y,
                                                 use_logdet=True)
        elif self.unsupervised_loss == "variance":
            feats = jnp.concatenate([hx[:, :self.eprojs], hy[:, :self.eprojs]], 0)
            m = jnp.concatenate([mask_x, mask_y], axis=0)
            v = jnp.var(feats, axis=1, ddof=1)
            loss_unsupervised = jnp.sum(v * m) / jnp.sum(m)
        else:
            loss_unsupervised = 0.0

        # TODO(synk): attention Decoder (loss_text, acc) and CTC depend on
        # base.Decoder / base.CTC / base.Att*, which are not provided.
        loss_text, acc = None, None
        return loss_text, loss_unsupervised, acc


# ----------------------------------------------------------------------------
if __name__ == "__main__":
    key = jax.random.PRNGKey(0)
    kx, ky = jax.random.split(key)

    idim, odim = 8, 11
    B = 2
    xlens = [16, 12]          # speech feature lengths (sorted descending)
    ylens = [8, 6]            # token-id lengths (sorted descending)
    Tx, Ty = max(xlens), max(ylens)

    xpad = jax.random.normal(kx, (B, Tx, idim), jnp.float32)
    xmask = (jnp.arange(Tx)[None, :] < jnp.asarray(xlens)[:, None])[:, :, None]
    xpad = xpad * xmask

    ypad = jax.random.randint(ky, (B, Ty), 0, odim - 1)
    ymask = jnp.arange(Ty)[None, :] < jnp.asarray(ylens)[:, None]
    ypad = jnp.where(ymask, ypad, 0).astype(jnp.int32)

    model = E2E(idim, odim, eprojs=32, eunits=32, elayers=2,
                unsupervised_loss="mmd", seed=0)

    _, loss_mmd, _ = model.forward(xpad, xlens, ypad, ylens)
    loss_mmd = jax.block_until_ready(loss_mmd)

    # also exercise the gauss_kld path (masked mean/cov Pallas kernel)
    (hx, mx), (hy, my) = model.forward(xpad, xlens, ypad, ylens, only_encoder=True)
    loss_gauss = jax.block_until_ready(gauss_kld_masked(hx, mx, hy, my))

    assert bool(jnp.isfinite(loss_mmd)) and bool(jnp.isfinite(loss_gauss))
    print("KERNEL_OK")
</pallas_src>

<mosaic_0001>
module attributes {stable_mosaic.version = 11 : i64} {
  func.func @_linear_kernel(%arg0: i32, %arg1: memref<16x128xf32, #tpu.memory_space<vmem>>, %arg2: memref<128x256xf32, #tpu.memory_space<vmem>>, %arg3: memref<1x256xf32, #tpu.memory_space<vmem>>, %arg4: memref<16x256xf32, #tpu.memory_space<vmem>>) attributes {dimension_semantics = [#tpu.dimension_semantics<parallel>], iteration_bounds = array<i64: 1>, scalar_prefetch = 0 : i64, scratch_operands = 0 : i64, tpu.core_type = #tpu.core_type<tc>, window_params = [{transform_indices = @transform_0, window_bounds = array<i64: 16, 128>}, {pipeline_mode = #tpu.pipeline_mode<synchronous>, transform_indices = @transform_1, window_bounds = array<i64: 128, 256>}, {pipeline_mode = #tpu.pipeline_mode<synchronous>, transform_indices = @transform_2, window_bounds = array<i64: 1, 256>}, {transform_indices = @transform_3, window_bounds = array<i64: 16, 256>}]} {
    %c0 = arith.constant 0 : index
    %c0_0 = arith.constant 0 : index
    %0 = vector.load %arg1[%c0, %c0_0] : memref<16x128xf32, #tpu.memory_space<vmem>>, vector<16x128xf32>
    %c0_1 = arith.constant 0 : index
    %c0_2 = arith.constant 0 : index
    %1 = vector.load %arg2[%c0_1, %c0_2] : memref<128x256xf32, #tpu.memory_space<vmem>>, vector<128x256xf32>
    %cst = arith.constant dense<0.000000e+00> : vector<16x256xf32>
    %2 = tpu.matmul %0, %1, %cst {dimension_numbers = #tpu.dot_dimension_numbers<[1], [0], [0], [1], [0, 0, 1, 1], [], []>} : vector<16x128xf32>, vector<128x256xf32>, vector<16x256xf32> -> vector<16x256xf32>
    %c0_3 = arith.constant 0 : index
    %c0_4 = arith.constant 0 : index
    %3 = vector.load %arg3[%c0_3, %c0_4] : memref<1x256xf32, #tpu.memory_space<vmem>>, vector<1x256xf32>
    %4 = vector.broadcast %3 : vector<1x256xf32> to vector<16x256xf32>
    %5 = arith.addf %2, %4 : vector<16x256xf32>
    %c0_5 = arith.constant 0 : index
    %c0_6 = arith.constant 0 : index
    %6 = vector.load %arg4[%c0_5, %c0_6] : memref<16x256xf32, #tpu.memory_space<vmem>>, vector<16x256xf32>
    tpu.vector_store %arg4[%c0_5, %c0_6], %5 {strides = array<i32>} : memref<16x256xf32, #tpu.memory_space<vmem>>, vector<16x256xf32>,
    return
  }
  func.func @transform_0(%arg0: i32) -> (i32, i32) {
    %c0_i32 = arith.constant 0 : i32
    %c0_i32_0 = arith.constant 0 : i32
    return %arg0, %c0_i32 : i32, i32
  }
  func.func @transform_1(%arg0: i32) -> (i32, i32) {
    %c0_i32 = arith.constant 0 : i32
    %c0_i32_0 = arith.constant 0 : i32
    %c0_i32_1 = arith.constant 0 : i32
    return %c0_i32, %c0_i32_0 : i32, i32
  }
  func.func @transform_2(%arg0: i32) -> (i32, i32) {
    %c0_i32 = arith.constant 0 : i32
    %c0_i32_0 = arith.constant 0 : i32
    %c0_i32_1 = arith.constant 0 : i32
    return %c0_i32, %c0_i32_0 : i32, i32
  }
  func.func @transform_3(%arg0: i32) -> (i32, i32) {
    %c0_i32 = arith.constant 0 : i32
    %c0_i32_0 = arith.constant 0 : i32
    return %arg0, %c0_i32 : i32, i32
  }
}

</mosaic_0001>

<llo_original>
// kernel: tpu_custom_call.1
$region0: #{tpu_custom_call.1}
  #allocation0 [shape = 'u32[]', space=smem, size = 0x4, offset = 0x4, fixed_abs, tag = 'smem constant byte address 0x4 - core index']
  #allocation1 [shape = 'u32[144,128]{1,0:T(1,128)}', space=vmem, size = 0x12000, scoped, tag = 'internal scratch']
  %s0 = inlined_call_operand.hbm [shape: f32[16,128], index: 0, kind: input, shape index: {}]
  %s1 = inlined_call_operand.hbm [shape: f32[128,256], index: 1, kind: input, shape index: {}]
  %s2 = inlined_call_operand.vmem [shape: f32[1,256], index: 2, kind: input, shape index: {}]
  %s3 = inlined_call_operand.hbm [shape: f32[16,256], index: 3, kind: output, shape index: {}]
  %s4 = sld [smem:[#allocation0]]
  $region30: #{tpu_custom_call.1} parent=0
    _
  %s6 = ssub.s32 1, %s4
  %s7 = scalar_select 0, %s6, %s4
  $region1: #{tpu_custom_call.1} parent=0
    #allocation2 [shape = 'u8[8192]{0}', space=vmem, size = 0x2000, scoped, tag = 'input window, operand 0, single buffered']
    #allocation3 [shape = 's32[1]{0}', space=sflag, size = 0x4, scoped, tag = 'scoped memory for tpu_custom_call.1']
    #allocation4 [shape = 's32[1]{0}', space=sflag, size = 0x4, scoped, tag = 'scoped memory for tpu_custom_call.1']
    #allocation5 [shape = 'u8[131072]{0}', space=vmem, size = 0x20000, scoped, tag = 'input window, operand 1, single buffered']
    #allocation6 [shape = 's32[1]{0}', space=sflag, size = 0x4, scoped, tag = 'scoped memory for tpu_custom_call.1']
    #allocation7 [shape = 'u8[16384]{0}', space=vmem, size = 0x4000, scoped, tag = 'output window, operand 0, single buffered']
    %8 = vsyncpa [#allocation3], 0
    %9 = vsyncpa [#allocation6], 0
    %10 = vsyncpa [#allocation4], 0
    // Predicated region
    $region2: #{tpu_custom_call.1} parent=1 // pred_check
      _
    $region3: #{tpu_custom_call.1} parent=1 // pred_check_branch
      %12 = sbr.rel (0) target = $region5
    $region4: #{tpu_custom_call.1} parent=1 // pred_region
      %s14 = ssub.s32 256, 256
      %15 = vsyncadd [#allocation3], %s14
      %s16 = sshll.u32 [#allocation2], 4
      %s17 = int_to_ptr.vmem [resolvable:$true] %s16
      %22 = dma.hbm_to_vmem [thread:$0]  %s0, 256, %s17, [#allocation3], 128, 128, 8
    $region5: #{tpu_custom_call.1} parent=1 // pred_fallthru
      _
    // Predicated region
    $region6: #{tpu_custom_call.1} parent=1 // pred_check
      _
    $region7: #{tpu_custom_call.1} parent=1 // pred_check_branch
      %24 = sbr.rel (0) target = $region9
    $region8: #{tpu_custom_call.1} parent=1 // pred_region
      %s26 = ssub.s32 4096, 4096
      %27 = vsyncadd [#allocation6], %s26
      %s28 = sshll.u32 [#allocation5], 4
      %s29 = int_to_ptr.vmem [resolvable:$true] %s28
      %34 = dma.hbm_to_vmem [thread:$0]  %s1, 4096, %s29, [#allocation6], 256, 256, 16
    $region9: #{tpu_custom_call.1} parent=1 // pred_fallthru
      _
    // Predicated region
    $region10: #{tpu_custom_call.1} parent=1 // pred_check
      _
    $region11: #{tpu_custom_call.1} parent=1 // pred_check_branch
      %36 = sbr.rel (0) target = $region13
    $region12: #{tpu_custom_call.1} parent=1 // pred_region
      _
    $region13: #{tpu_custom_call.1} parent=1 // pred_fallthru
      _
    // Predicated region
    $region14: #{tpu_custom_call.1} parent=1 // pred_check
      _
    $region15: #{tpu_custom_call.1} parent=1 // pred_check_branch
      %38 = sbr.rel (0) target = $region17
    $region16: #{tpu_custom_call.1} parent=1 // pred_region
      %39 = dma.done [#allocation3], 256
    $region17: #{tpu_custom_call.1} parent=1 // pred_fallthru
      _
    // Predicated region
    $region18: #{tpu_custom_call.1} parent=1 // pred_check
      _
    $region19: #{tpu_custom_call.1} parent=1 // pred_check_branch
      %41 = sbr.rel (0) target = $region21
    $region20: #{tpu_custom_call.1} parent=1 // pred_region
      %42 = dma.done [#allocation6], 4096
    $region21: #{tpu_custom_call.1} parent=1 // pred_fallthru
      _
    %v43 = vld [vmem:[#allocation2] sm:$0xff]
    %v44 = vld [vmem:[#allocation2 + $0x8] sm:$0xff]
    %v45 = vld [vmem:[#allocation5] sm:$0xff]
    %v46 = vld [vmem:[#allocation5 + $0x8] sm:$0xff]
    %v47 = vld [vmem:[#allocation5 + $0x10] sm:$0xff]
    %v48 = vld [vmem:[#allocation5 + $0x18] sm:$0xff]
    %v49 = vld [vmem:[#allocation5 + $0x20] sm:$0xff]
    %v50 = vld [vmem:[#allocation5 + $0x28] sm:$0xff]
    %v51 = vld [vmem:[#allocation5 + $0x30] sm:$0xff]
    %v52 = vld [vmem:[#allocation5 + $0x38] sm:$0xff]
    %v53 = vld [vmem:[#allocation5 + $0x40] sm:$0xff]
    %v54 = vld [vmem:[#allocation5 + $0x48] sm:$0xff]
    %v55 = vld [vmem:[#allocation5 + $0x50] sm:$0xff]
    %v56 = vld [vmem:[#allocation5 + $0x58] sm:$0xff]
    %v57 = vld [vmem:[#allocation5 + $0x60] sm:$0xff]
    %v58 = vld [vmem:[#allocation5 + $0x68] sm:$0xff]
    %v59 = vld [vmem:[#allocation5 + $0x70] sm:$0xff]
    %v60 = vld [vmem:[#allocation5 + $0x78] sm:$0xff]
    %v61 = vld [vmem:[#allocation5 + $0x80] sm:$0xff]
    %v62 = vld [vmem:[#allocation5 + $0x88] sm:$0xff]
    %v63 = vld [vmem:[#allocation5 + $0x90] sm:$0xff]
    %v64 = vld [vmem:[#allocation5 + $0x98] sm:$0xff]
    %v65 = vld [vmem:[#allocation5 + $0xa0] sm:$0xff]
    %v66 = vld [vmem:[#allocation5 + $0xa8] sm:$0xff]
    %v67 = vld [vmem:[#allocation5 + $0xb0] sm:$0xff]
    %v68 = vld [vmem:[#allocation5 + $0xb8] sm:$0xff]
    %v69 = vld [vmem:[#allocation5 + $0xc0] sm:$0xff]
    %v70 = vld [vmem:[#allocation5 + $0xc8] sm:$0xff]
    %v71 = vld [vmem:[#allocation5 + $0xd0] sm:$0xff]
    %v72 = vld [vmem:[#allocation5 + $0xd8] sm:$0xff]
    %v73 = vld [vmem:[#allocation5 + $0xe0] sm:$0xff]
    %v74 = vld [vmem:[#allocation5 + $0xe8] sm:$0xff]
    %v75 = vld [vmem:[#allocation5 + $0xf0] sm:$0xff]
    %v76 = vld [vmem:[#allocation5 + $0xf8] sm:$0xff]
    %v77 = vld [vmem:[%s2] sm:$0x3]
    %v79 = vlaneseq
    %v80 = vshrl.u32 %v79, 7
    %v81 = vsub.s32 0, %v80
    %v82 = vrot.slane %v77, %v81
    %v83 = vlaneseq
    %v84 = vshrl.u32 %v83, 7
    %v85 = vsub.s32 1, %v84
    %v86 = vrot.slane %v77, %v85
    %89 = vmatprep.subr.mxu0 %v46
    %90 = vmatpush1.msra.mxu0 %v45
    %91 = vmatprep.subr.mxu0 %v48
    %92 = vmatpush1.msra.mxu0 %v47
    %93 = vmatprep.subr.mxu0 %v50
    %94 = vmatpush1.msra.mxu0 %v49
    %95 = vmatprep.subr.mxu0 %v52
    %96 = vmatpush1.msra.mxu0 %v51
    %97 = vmatprep.subr.mxu0 %v54
    %98 = vmatpush1.msra.mxu0 %v53
    %99 = vmatprep.subr.mxu0 %v56
    %100 = vmatpush1.msra.mxu0 %v55
    %101 = vmatprep.subr.mxu0 %v58
    %102 = vmatpush1.msra.mxu0 %v57
    %103 = vmatprep.subr.mxu0 %v60
    %104 = vmatpush1.msra.mxu0 %v59
    %105 = vmatprep.subr.mxu0 %v62
    %106 = vmatpush1.msra.mxu0 %v61
    %107 = vmatprep.subr.mxu0 %v64
    %108 = vmatpush1.msra.mxu0 %v63
    %109 = vmatprep.subr.mxu0 %v66
    %110 = vmatpush1.msra.mxu0 %v65
    %111 = vmatprep.subr.mxu0 %v68
    %112 = vmatpush1.msra.mxu0 %v67
    %113 = vmatprep.subr.mxu0 %v70
    %114 = vmatpush1.msra.mxu0 %v69
    %115 = vmatprep.subr.mxu0 %v72
    %116 = vmatpush1.msra.mxu0 %v71
    %117 = vmatprep.subr.mxu0 %v74
    %118 = vmatpush1.msra.mxu0 %v73
    %119 = vmatprep.subr.mxu0 %v76
    %120 = vmatpush1.msra.mxu0 %v75
    %121 = vmatprep.subr.mxu0 0.0
    %122 = vmatpush1.msra.mxu0 0.0
    %123 = vmatprep.subr.mxu0 0.0
    %124 = vmatpush1.msra.mxu0 0.0
    %125 = vmatprep.subr.mxu0 0.0
    %126 = vmatpush1.msra.mxu0 0.0
    %127 = vmatprep.subr.mxu0 0.0
    %128 = vmatpush1.msra.mxu0 0.0
    %129 = vmatprep.subr.mxu0 0.0
    %130 = vmatpush1.msra.mxu0 0.0
    %131 = vmatprep.subr.mxu0 0.0
    %132 = vmatpush1.msra.mxu0 0.0
    %133 = vmatprep.subr.mxu0 0.0
    %134 = vmatpush1.msra.mxu0 0.0
    %135 = vmatprep.subr.mxu0 0.0
    %136 = vmatpush1.msra.mxu0 0.0
    %137 = vmatprep.subr.mxu0 0.0
    %138 = vmatpush1.msra.mxu0 0.0
    %139 = vmatprep.subr.mxu0 0.0
    %140 = vmatpush1.msra.mxu0 0.0
    %141 = vmatprep.subr.mxu0 0.0
    %142 = vmatpush1.msra.mxu0 0.0
    %143 = vmatprep.subr.mxu0 0.0
    %144 = vmatpush1.msra.mxu0 0.0
    %145 = vmatprep.subr.mxu0 0.0
    %146 = vmatpush1.msra.mxu0 0.0
    %147 = vmatprep.subr.mxu0 0.0
    %148 = vmatpush1.msra.mxu0 0.0
    %149 = vmatprep.subr.mxu0 0.0
    %150 = vmatpush1.msra.mxu0 0.0
    %151 = vmatprep.subr.mxu0 0.0
    %152 = vmatpush1.msra.mxu0 0.0
    %153 = vmatprep.mubr.f32.mxu0 0.0
    %154 = vmatmul.mubr.f32.gmra.mrb[0].mxu0 %v43
    %v155 = vpop.f32.mrb[0].mxu0
    %v156 = vadd.f32 %v82, %v155
    %v157 = vpop.f32.mrb[0].mxu0
    %v158 = vadd.f32 %v86, %v157
    %159 = vmatprep.mubr.f32.mxu0 0.0
    %160 = vmatmul.mubr.f32.gmra.mrb[0].mxu0 %v44
    %v161 = vpop.f32.mrb[0].mxu0
    %v162 = vadd.f32 %v82, %v161
    %v163 = vpop.f32.mrb[0].mxu0
    %v164 = vadd.f32 %v86, %v163
    %165 = vdwg.mxu0
    %166 = vst [vmem:[#allocation7] sm:$0xff] %v156
    %167 = vst [vmem:[#allocation7 + $0x8] sm:$0xff] %v158
    %168 = vst [vmem:[#allocation7 + $0x10] sm:$0xff] %v162
    %169 = vst [vmem:[#allocation7 + $0x18] sm:$0xff] %v164
    // Predicated region
    $region22: #{tpu_custom_call.1} parent=1 // pred_check
      _
    $region23: #{tpu_custom_call.1} parent=1 // pred_check_branch
      %171 = sbr.rel (0) target = $region25
    $region24: #{tpu_custom_call.1} parent=1 // pred_region
      %s173 = ssub.s32 512, 512
      %174 = vsyncadd [#allocation4], %s173
      %s175 = sshll.u32 [#allocation7], 4
      %s176 = int_to_ptr.vmem [resolvable:$true] %s175
      %181 = dma.vmem_to_hbm [thread:$0]  %s176, 512, %s3, [#allocation4], 256, 256, 16
    $region25: #{tpu_custom_call.1} parent=1 // pred_fallthru
      _
    // Predicated region
    $region26: #{tpu_custom_call.1} parent=1 // pred_check
      _
    $region27: #{tpu_custom_call.1} parent=1 // pred_check_branch
      %183 = sbr.rel (0) target = $region29
    $region28: #{tpu_custom_call.1} parent=1 // pred_region
      %184 = dma.done [#allocation4], 512
    $region29: #{tpu_custom_call.1} parent=1 // pred_fallthru
      _
    %185 = vsyncpa [#allocation3], 1
    %186 = vsyncpa [#allocation6], 1
    %187 = vsyncpa [#allocation4], 1

</llo_original>
